<compile_context>
chip_gen: v6e
topology: v6e:2x2x1
jax: 0.10.0
libtpu: 0.0.40
codegen_flags: <defaults>
</compile_context>

<pallas_src>
import functools

import jax
import jax.numpy as jnp
from jax.experimental import pallas as pl
from jax.experimental.pallas import tpu as pltpu


def _round_up(x, m):
    return (x + m - 1) // m * m


def _vmem_input_budget_bytes():
    """Per-core VMEM budget for the 3 double-buffered embedding tiles."""
    phys = 128 * 1024 * 1024
    try:
        info = pltpu.get_tpu_info()
        phys = int(getattr(info, "vmem_capacity_bytes", phys))
    except Exception:
        pass
    # v5e/v6e: 128 MiB physical  -> capped at 28 MiB.
    # v7x:      64 MiB physical  -> 64/2 - 4 = 28 MiB (scoped default 32 MiB).
    return min(28 * 1024 * 1024, phys // 2 - 4 * 1024 * 1024)


def _contrastive_loss_kernel(margin_ref, e1_ref, e2_ref, e3_ref, out_ref,
                             acc_ref, *, batch, block_b, tiles_per_core):
    c = pl.program_id(0)   # TensorCore split  ("parallel")
    i = pl.program_id(1)   # batch-tile reduction ("arbitrary")

    @pl.when(i == 0)
    def _init():
        acc_ref[...] = jnp.zeros_like(acc_ref)

    e1 = e1_ref[...].astype(jnp.float32)
    e2 = e2_ref[...].astype(jnp.float32)
    e3 = e3_ref[...].astype(jnp.float32)

    # Per-row dot products and squared norms (reduce along the lane axis).
    dot12 = jnp.sum(e1 * e2, axis=1, keepdims=True)   # (TB, 1)
    dot13 = jnp.sum(e1 * e3, axis=1, keepdims=True)   # (TB, 1)
    s1 = jnp.sum(e1 * e1, axis=1, keepdims=True)      # (TB, 1)
    s2 = jnp.sum(e2 * e2, axis=1, keepdims=True)      # (TB, 1)
    s3 = jnp.sum(e3 * e3, axis=1, keepdims=True)      # (TB, 1)

    # cosine similarity via rsqrt (EUP slot) instead of sqrt + divide (VALU).
    r1 = jax.lax.rsqrt(s1)
    cos12 = dot12 * r1 * jax.lax.rsqrt(s2)
    cos13 = dot13 * r1 * jax.lax.rsqrt(s3)

    # distance(a,b) = 1 - cos(a,b)  =>  d12 - d13 + margin = cos13 - cos12 + m
    margin = margin_ref[0]
    hinge = jnp.maximum(cos13 - cos12 + margin, 0.0)   # (TB, 1)

    # Mask rows of padded / duplicated (clamped) tiles so they contribute 0.
    # Uses the UNclamped global tile index, so clamped-duplicate tiles on the
    # second core are fully masked out.
    global_tile = c * tiles_per_core + i
    row = jax.lax.broadcasted_iota(jnp.int32, hinge.shape, 0) + global_tile * block_b
    hinge = jnp.where(row < batch, hinge, 0.0)

    acc_ref[...] += jnp.sum(hinge, keepdims=True)      # (1, 1) running sum

    @pl.when(i == pl.num_programs(1) - 1)
    def _finalize():
        # Per-core partial sum, broadcast into this core's (8,128) output block.
        out_ref[...] = jnp.broadcast_to(acc_ref[...], out_ref.shape)


def contrastive_loss_ref(emb1, emb2, emb3, margin=1.0):
    """Pure-JAX reference mirroring the PyTorch module."""
    def distance(a, b):
        return 1.0 - jnp.sum(a * b, axis=1) / (
            jnp.linalg.norm(a, axis=1) * jnp.linalg.norm(b, axis=1))

    dis = distance(emb1, emb2) - distance(emb1, emb3) + margin
    dis = jnp.where(dis < 0, 0.0, dis)
    return jnp.mean(dis)


def contrastive_loss(emb1, emb2, emb3, margin=1.0, *, block_b=None,
                     use_kernel=None):
    """Pallas TPU implementation of ContrastiveLoss.forward."""
    assert emb1.shape == emb2.shape == emb3.shape
    B, D = emb1.shape
    itemsize = jnp.dtype(emb1.dtype).itemsize

    # Tiny inputs: launch + pipeline prologue dominate -> let XLA fuse it.
    if use_kernel is None:
        use_kernel = 3 * B * D * itemsize >= (1 << 20)
    if not use_kernel:
        return contrastive_loss_ref(emb1, emb2, emb3, margin)

    budget = _vmem_input_budget_bytes()
    if block_b is None:
        # 3 inputs x 2 pipeline buffers, with the lane dim padded to 128.
        bytes_per_row = 3 * 2 * _round_up(D, 128) * itemsize
        tb = budget // bytes_per_row
        tb = max(8, min(8192, (tb // 8) * 8))
        block_b = B if B <= tb else tb
    num_tiles = pl.cdiv(B, block_b)

    # Two-way batch split: sharded across TensorCores on v7x, plain outer loop
    # on single-core chips.  Odd tile counts are handled by clamping the block
    # index (duplicate tile is fully masked in-kernel).
    num_cores = 2
    tiles_per_core = pl.cdiv(num_tiles, num_cores)

    margin_arr = jnp.asarray([margin], dtype=jnp.float32)

    kernel = functools.partial(_contrastive_loss_kernel, batch=B,
                               block_b=block_b, tiles_per_core=tiles_per_core)

    def emb_index_map(c, i):
        return (jnp.minimum(c * tiles_per_core + i, num_tiles - 1), 0)

    emb_spec = pl.BlockSpec((block_b, D), emb_index_map)

    out = pl.pallas_call(
        kernel,
        out_shape=jax.ShapeDtypeStruct((num_cores * 8, 128), jnp.float32),
        grid=(num_cores, tiles_per_core),
        in_specs=[
            pl.BlockSpec(memory_space=pltpu.MemorySpace.SMEM),  # margin scalar
            emb_spec, emb_spec, emb_spec,
        ],
        out_specs=pl.BlockSpec((8, 128), lambda c, i: (c, 0)),
        scratch_shapes=[pltpu.VMEM((1, 1), jnp.float32)],
        compiler_params=pltpu.CompilerParams(
            dimension_semantics=("parallel", "arbitrary"),
            vmem_limit_bytes=budget + 4 * 1024 * 1024,
        ),
    )(margin_arr, emb1, emb2, emb3)

    # Row c*8, col 0 holds core c's partial sum of the hinge terms.
    total = jnp.sum(out[::8, 0])
    return total / jnp.float32(B)


if __name__ == "__main__":
    key = jax.random.PRNGKey(0)
    k1, k2, k3 = jax.random.split(key, 3)

    # Small shapes consistent with the module: batch=8, hidden=32.
    # Force the kernel path (inputs this tiny would otherwise use the fused
    # pure-JAX fallback).
    B, D = 8, 32
    e1 = jax.random.normal(k1, (B, D), dtype=jnp.float32)
    e2 = jax.random.normal(k2, (B, D), dtype=jnp.float32)
    e3 = jax.random.normal(k3, (B, D), dtype=jnp.float32)
    loss = contrastive_loss(e1, e2, e3, margin=1.0, use_kernel=True)
    jax.block_until_ready(loss)
    ref = contrastive_loss_ref(e1, e2, e3, margin=1.0)
    assert jnp.allclose(loss, ref, atol=1e-5, rtol=1e-5), (loss, ref)

    # Tiled path: odd tile count (core split + clamped duplicate tile) and a
    # partial, masked last tile.
    B2, D2 = 300, 32
    f1 = jax.random.normal(k1, (B2, D2), dtype=jnp.float32)
    f2 = jax.random.normal(k2, (B2, D2), dtype=jnp.float32)
    f3 = jax.random.normal(k3, (B2, D2), dtype=jnp.float32)
    loss2 = contrastive_loss(f1, f2, f3, margin=0.5, block_b=128, use_kernel=True)
    jax.block_until_ready(loss2)
    ref2 = contrastive_loss_ref(f1, f2, f3, margin=0.5)
    assert jnp.allclose(loss2, ref2, atol=1e-5, rtol=1e-5), (loss2, ref2)

    # Auto tile sizing: large (8k-row) tiles, 2-way split, partial last tile.
    B3, D3 = 20000, 64
    g1 = jax.random.normal(k1, (B3, D3), dtype=jnp.float32)
    g2 = jax.random.normal(k2, (B3, D3), dtype=jnp.float32)
    g3 = jax.random.normal(k3, (B3, D3), dtype=jnp.float32)
    loss3 = contrastive_loss(g1, g2, g3, margin=1.0)
    jax.block_until_ready(loss3)
    ref3 = contrastive_loss_ref(g1, g2, g3, margin=1.0)
    assert jnp.allclose(loss3, ref3, atol=1e-4, rtol=1e-4), (loss3, ref3)

    print("KERNEL_OK")
</pallas_src>

<mosaic_0001>
module attributes {stable_mosaic.version = 11 : i64} {
  func.func @_contrastive_loss_kernel(%arg0: i32, %arg1: i32, %arg2: memref<1xf32, #tpu.memory_space<smem>>, %arg3: memref<8x32xf32, #tpu.memory_space<vmem>>, %arg4: memref<8x32xf32, #tpu.memory_space<vmem>>, %arg5: memref<8x32xf32, #tpu.memory_space<vmem>>, %arg6: memref<8x128xf32, #tpu.memory_space<vmem>>, %arg7: memref<1x1xf32, #tpu.memory_space<vmem>>) attributes {dimension_semantics = [#tpu.dimension_semantics<parallel>, #tpu.dimension_semantics<arbitrary>], iteration_bounds = array<i64: 2, 1>, scalar_prefetch = 0 : i64, scratch_operands = 1 : i64, tpu.core_type = #tpu.core_type<tc>, window_params = [{transform_indices = @transform_0, window_bounds = array<i64: 1>}, {transform_indices = @transform_1, window_bounds = array<i64: 8, 32>}, {transform_indices = @transform_2, window_bounds = array<i64: 8, 32>}, {transform_indices = @transform_3, window_bounds = array<i64: 8, 32>}, {transform_indices = @transform_4, window_bounds = array<i64: 8, 128>}]} {
    %c0_i32 = arith.constant 0 : i32
    %0 = arith.cmpi eq, %arg1, %c0_i32 : i32
    %1 = arith.extui %0 : i1 to i32
    %c0_i32_0 = arith.constant 0 : i32
    %2 = arith.cmpi ne, %1, %c0_i32_0 : i32
    scf.if %2 {
      %cst_21 = arith.constant 0.000000e+00 : f32
      %55 = vector.broadcast %cst_21 : f32 to vector<1x1xf32>
      %c0_22 = arith.constant 0 : index
      %c0_23 = arith.constant 0 : index
      %56 = vector.load %arg7[%c0_22, %c0_23] : memref<1x1xf32, #tpu.memory_space<vmem>>, vector<1x1xf32>
      tpu.vector_store %arg7[%c0_22, %c0_23], %55 {strides = array<i32>} : memref<1x1xf32, #tpu.memory_space<vmem>>, vector<1x1xf32>,
    } else {
    }
    %c0 = arith.constant 0 : index
    %c0_1 = arith.constant 0 : index
    %3 = vector.load %arg3[%c0, %c0_1] : memref<8x32xf32, #tpu.memory_space<vmem>>, vector<8x32xf32>
    %c0_2 = arith.constant 0 : index
    %c0_3 = arith.constant 0 : index
    %4 = vector.load %arg4[%c0_2, %c0_3] : memref<8x32xf32, #tpu.memory_space<vmem>>, vector<8x32xf32>
    %c0_4 = arith.constant 0 : index
    %c0_5 = arith.constant 0 : index
    %5 = vector.load %arg5[%c0_4, %c0_5] : memref<8x32xf32, #tpu.memory_space<vmem>>, vector<8x32xf32>
    %6 = arith.mulf %3, %4 : vector<8x32xf32>
    %cst = arith.constant dense<0.000000e+00> : vector<8xf32>
    %7 = vector.multi_reduction <add>, %6, %cst [1] : vector<8x32xf32> to vector<8xf32>
    %8 = vector.shape_cast %7 : vector<8xf32> to vector<8x1xf32>
    %9 = arith.mulf %3, %5 : vector<8x32xf32>
    %cst_6 = arith.constant dense<0.000000e+00> : vector<8xf32>
    %10 = vector.multi_reduction <add>, %9, %cst_6 [1] : vector<8x32xf32> to vector<8xf32>
    %11 = vector.shape_cast %10 : vector<8xf32> to vector<8x1xf32>
    %12 = arith.mulf %3, %3 : vector<8x32xf32>
    %cst_7 = arith.constant dense<0.000000e+00> : vector<8xf32>
    %13 = vector.multi_reduction <add>, %12, %cst_7 [1] : vector<8x32xf32> to vector<8xf32>
    %14 = vector.shape_cast %13 : vector<8xf32> to vector<8x1xf32>
    %15 = arith.mulf %4, %4 : vector<8x32xf32>
    %cst_8 = arith.constant dense<0.000000e+00> : vector<8xf32>
    %16 = vector.multi_reduction <add>, %15, %cst_8 [1] : vector<8x32xf32> to vector<8xf32>
    %17 = vector.shape_cast %16 : vector<8xf32> to vector<8x1xf32>
    %18 = arith.mulf %5, %5 : vector<8x32xf32>
    %cst_9 = arith.constant dense<0.000000e+00> : vector<8xf32>
    %19 = vector.multi_reduction <add>, %18, %cst_9 [1] : vector<8x32xf32> to vector<8xf32>
    %20 = vector.shape_cast %19 : vector<8xf32> to vector<8x1xf32>
    %21 = math.rsqrt %14 : vector<8x1xf32>
    %22 = arith.mulf %8, %21 : vector<8x1xf32>
    %23 = math.rsqrt %17 : vector<8x1xf32>
    %24 = arith.mulf %22, %23 : vector<8x1xf32>
    %25 = arith.mulf %11, %21 : vector<8x1xf32>
    %26 = math.rsqrt %20 : vector<8x1xf32>
    %27 = arith.mulf %25, %26 : vector<8x1xf32>
    %c0_10 = arith.constant 0 : index
    %28 = memref.load %arg2[%c0_10] : memref<1xf32, #tpu.memory_space<smem>>
    %29 = arith.subf %27, %24 : vector<8x1xf32>
    %30 = vector.broadcast %28 : f32 to vector<8x1xf32>
    %31 = arith.addf %29, %30 : vector<8x1xf32>
    %cst_11 = arith.constant 0.000000e+00 : f32
    %32 = vector.broadcast %cst_11 : f32 to vector<8x1xf32>
    %33 = arith.maximumf %31, %32 : vector<8x1xf32>
    %c1_i32 = arith.constant 1 : i32
    %34 = arith.muli %arg0, %c1_i32 : i32
    %35 = arith.addi %34, %arg1 : i32
    %36 = tpu.iota {dimensions = array<i32: 0>} : vector<8x1xi32>
    %c8_i32 = arith.constant 8 : i32
    %37 = arith.muli %35, %c8_i32 : i32
    %38 = vector.broadcast %37 : i32 to vector<8x1xi32>
    %39 = arith.addi %36, %38 : vector<8x1xi32>
    %c8_i32_12 = arith.constant 8 : i32
    %40 = vector.broadcast %c8_i32_12 : i32 to vector<8x1xi32>
    %41 = arith.cmpi slt, %39, %40 : vector<8x1xi32>
    %cst_13 = arith.constant 0.000000e+00 : f32
    %42 = vector.broadcast %cst_13 : f32 to vector<8x1xf32>
    %43 = arith.select %41, %33, %42 : vector<8x1xi1>, vector<8x1xf32>
    %c0_14 = arith.constant 0 : index
    %c0_15 = arith.constant 0 : index
    %44 = vector.load %arg7[%c0_14, %c0_15] : memref<1x1xf32, #tpu.memory_space<vmem>>, vector<1x1xf32>
    %45 = vector.shape_cast %43 : vector<8x1xf32> to vector<1x8x1xf32>
    %cst_16 = arith.constant dense<0.000000e+00> : vector<1xf32>
    %46 = vector.multi_reduction <add>, %45, %cst_16 [1, 2] : vector<1x8x1xf32> to vector<1xf32>
    %47 = vector.shape_cast %46 : vector<1xf32> to vector<1x1x1xf32>
    %48 = vector.extract %47[0, 0, 0] : f32 from vector<1x1x1xf32>
    %49 = vector.broadcast %48 : f32 to vector<1x1xf32>
    %50 = arith.addf %44, %49 : vector<1x1xf32>
    %c0_17 = arith.constant 0 : index
    %c0_18 = arith.constant 0 : index
    %51 = vector.load %arg7[%c0_17, %c0_18] : memref<1x1xf32, #tpu.memory_space<vmem>>, vector<1x1xf32>
    tpu.vector_store %arg7[%c0_17, %c0_18], %50 {strides = array<i32>} : memref<1x1xf32, #tpu.memory_space<vmem>>, vector<1x1xf32>,
    %c0_i32_19 = arith.constant 0 : i32
    %52 = arith.cmpi eq, %arg1, %c0_i32_19 : i32
    %53 = arith.extui %52 : i1 to i32
    %c0_i32_20 = arith.constant 0 : i32
    %54 = arith.cmpi ne, %53, %c0_i32_20 : i32
    scf.if %54 {
      %c0_21 = arith.constant 0 : index
      %c0_22 = arith.constant 0 : index
      %55 = vector.load %arg7[%c0_21, %c0_22] : memref<1x1xf32, #tpu.memory_space<vmem>>, vector<1x1xf32>
      %56 = vector.shape_cast %55 : vector<1x1xf32> to vector<1x1xf32>
      %57 = vector.broadcast %56 : vector<1x1xf32> to vector<8x128xf32>
      %c0_23 = arith.constant 0 : index
      %c0_24 = arith.constant 0 : index
      %58 = vector.load %arg6[%c0_23, %c0_24] : memref<8x128xf32, #tpu.memory_space<vmem>>, vector<8x128xf32>
      tpu.vector_store %arg6[%c0_23, %c0_24], %57 {strides = array<i32>} : memref<8x128xf32, #tpu.memory_space<vmem>>, vector<8x128xf32>,
    } else {
    }
    return
  }
  func.func @transform_0(%arg0: i32, %arg1: i32) -> i32 {
    %c0_i32 = arith.constant 0 : i32
    %c0_i32_0 = arith.constant 0 : i32
    return %c0_i32 : i32
  }
  func.func @transform_1(%arg0: i32, %arg1: i32) -> (i32, i32) {
    %c1_i32 = arith.constant 1 : i32
    %0 = arith.muli %arg0, %c1_i32 : i32
    %1 = arith.addi %0, %arg1 : i32
    %c0_i32 = arith.constant 0 : i32
    %2 = arith.minsi %1, %c0_i32 : i32
    %c0_i32_0 = arith.constant 0 : i32
    %c0_i32_1 = arith.constant 0 : i32
    return %2, %c0_i32_0 : i32, i32
  }
  func.func @transform_2(%arg0: i32, %arg1: i32) -> (i32, i32) {
    %c1_i32 = arith.constant 1 : i32
    %0 = arith.muli %arg0, %c1_i32 : i32
    %1 = arith.addi %0, %arg1 : i32
    %c0_i32 = arith.constant 0 : i32
    %2 = arith.minsi %1, %c0_i32 : i32
    %c0_i32_0 = arith.constant 0 : i32
    %c0_i32_1 = arith.constant 0 : i32
    return %2, %c0_i32_0 : i32, i32
  }
  func.func @transform_3(%arg0: i32, %arg1: i32) -> (i32, i32) {
    %c1_i32 = arith.constant 1 : i32
    %0 = arith.muli %arg0, %c1_i32 : i32
    %1 = arith.addi %0, %arg1 : i32
    %c0_i32 = arith.constant 0 : i32
    %2 = arith.minsi %1, %c0_i32 : i32
    %c0_i32_0 = arith.constant 0 : i32
    %c0_i32_1 = arith.constant 0 : i32
    return %2, %c0_i32_0 : i32, i32
  }
  func.func @transform_4(%arg0: i32, %arg1: i32) -> (i32, i32) {
    %c0_i32 = arith.constant 0 : i32
    %c0_i32_0 = arith.constant 0 : i32
    return %arg0, %c0_i32 : i32, i32
  }
}

</mosaic_0001>

<llo_original>
// kernel: tpu_custom_call.1
$region0: #{tpu_custom_call.1}
  #allocation0 [shape = 'u32[]', space=smem, size = 0x4, offset = 0x4, fixed_abs, tag = 'smem constant byte address 0x4 - core index']
  #allocation1 [shape = 'u32[144,128]{1,0:T(1,128)}', space=vmem, size = 0x12000, scoped, tag = 'internal scratch']
  #allocation2 [shape = 'f32[1,1]{1,0:T(1,128)}', space=vmem, size = 0x200, scoped, tag = 'scratch operand']
  #allocation3 [shape = 'f32[1]{0:T(128)S(6)}', space=smem, size = 0x200, scoped, tag = 'scoped memory for tpu_custom_call.1']
  %s0 = inlined_call_operand.<no memory space> [shape: f32[1], index: 0, kind: input, shape index: {}]
  %s1 = inlined_call_operand.hbm [shape: f32[8,32], index: 1, kind: input, shape index: {}]
  %s2 = inlined_call_operand.hbm [shape: f32[8,32], index: 2, kind: input, shape index: {}]
  %s3 = inlined_call_operand.hbm [shape: f32[8,32], index: 3, kind: input, shape index: {}]
  %s4 = inlined_call_operand.hbm [shape: f32[16,128], index: 4, kind: output, shape index: {}]
  %s5 = sld [smem:[#allocation0]]
  $region69: #{tpu_custom_call.1} parent=0
    _
  %s7 = ssub.s32 1, %s5
  %s8 = scalar_select 0, %s7, %s5
  %9 = sst [smem:[#allocation3]] %s0
  $region1: #{tpu_custom_call.1} parent=0
    #allocation4 [shape = 'u8[8192]{0}', space=vmem, size = 0x2000, scoped, tag = 'input window, operand 1']
    #allocation5 [shape = 's32[2]{0}', space=sflag, size = 0x8, scoped, tag = 'scoped memory for tpu_custom_call.1']
    #allocation6 [shape = 's32[2]{0}', space=sflag, size = 0x8, scoped, tag = 'scoped memory for tpu_custom_call.1']
    #allocation7 [shape = 'u8[8192]{0}', space=vmem, size = 0x2000, scoped, tag = 'input window, operand 2']
    #allocation8 [shape = 's32[2]{0}', space=sflag, size = 0x8, scoped, tag = 'scoped memory for tpu_custom_call.1']
    #allocation9 [shape = 'u8[8192]{0}', space=vmem, size = 0x2000, scoped, tag = 'input window, operand 3']
    #allocation10 [shape = 'u8[8192]{0}', space=vmem, size = 0x2000, scoped, tag = 'output window, operand 0']
    %10 = vsyncpa [#allocation5], 0
    %s11 = scalar_lea.sflag [#allocation5], 1
    %12 = vsyncpa %s11, 0
    %13 = vsyncpa [#allocation8], 0
    %s14 = scalar_lea.sflag [#allocation8], 1
    %15 = vsyncpa %s14, 0
    %16 = vsyncpa [#allocation6], 0
    %s17 = scalar_lea.sflag [#allocation6], 1
    %18 = vsyncpa %s17, 0
    loop: start=0, step=1, limit=4
    $region2: #{tpu_custom_call.1} parent=1 // loop_pre_header
      _
    $region3: #{tpu_custom_call.1} parent=1 // loop_header
      %s20 = sphi 0, %s24
      %p21 = scmp.ge.s32.totalorder %s20, 4
      %s27 = sphi 0, %s39
      %s28 = sphi 0, %s35
      %s29 = sphi 0, %s27
      %s30 = sphi 0, %s28
      %s31 = sphi 0, %s29
      %s32 = sphi 0, %s30
      %s40 = sphi 0, %s40
      %s42 = sphi 0, %s40
      %s43 = sphi 0, %s42
      %s57 = sphi 0, %s43
      %s69 = sphi 0, %s71
      %s72 = sphi 0, %s69
      %s73 = sphi 0, %s72
      %s89 = sphi 0, %s73
      %s101 = sphi 0, %s103
      %s104 = sphi 0, %s101
      %s105 = sphi 0, %s104
      %s121 = sphi 0, %s105
      %s133 = sphi 0, %s135
      %s136 = sphi 0, %s133
      %s137 = sphi 0, %s136
      %s153 = sphi 0, %s137
      %s159 = sphi 0, %s161
      %s162 = sphi 0, %s159
      %s163 = sphi 0, %s162
      %s179 = sphi 0, %s163
    $region4: #{tpu_custom_call.1} parent=1 // loop_header_branch
      %23 = sbr.rel (%p21) target = $region8
    $region5: #{tpu_custom_call.1} parent=1 // loop_body
      %s25 = ssub.s32 %s20, 1
      %s26 = ssub.s32 %s20, 2
      %s33 = sadd.s32 1, %s28
      %p34 = scmp.ge.s32.totalorder %s33, 1
      %s35 = scalar_select %p34, 0, %s33
      %s36 = sadd.s32 1, %s27
      %s37 = scalar_select %p34, %s36, %s27
      %p38 = scmp.ge.s32.totalorder %s37, 2
      %s39 = scalar_select %p38, 0, %s37
      %s41 = sadd.s32 %s40, 1
      %p44 = scmp.eq.s32.totalorder %s20, 1
      %p45 = scmp.ne.s32.totalorder %s40, %s42
      %p46 = scmp.eq.s32.totalorder %s20, 0
      %p47 = por %p45, %p46
      %p48 = scmp.ne.s32.totalorder %s40, %s42
      %p49 = scmp.eq.s32.totalorder %s25, 1
      %p50 = por %p48, %p49
      %p51 = scmp.ne.s32.totalorder %s42, %s43
      %p52 = scmp.eq.s32.totalorder %s25, 0
      %p53 = por %p51, %p52
      %p54 = scmp.ne.s32.totalorder %s42, %s43
      %p55 = scmp.eq.s32.totalorder %s26, 1
      %p56 = por %p54, %p55
      %p58 = scmp.ne.s32.totalorder %s43, %s57
      %p59 = scmp.eq.s32.totalorder %s26, 0
      %p60 = por %p58, %p59
      %s61 = sadd.s32 %s27, %s28
      %p62 = scmp.lt.s32.totalorder %s61, 0
      %s63 = scalar_select %p62, %s61, 0
      %s64 = sadd.s32 %s39, %s35
      %p65 = scmp.lt.s32.totalorder %s64, 0
      %s66 = scalar_select %p65, %s64, 0
      %s67 = ssub.s32 %s63, %s66
      %p68 = scmp.eq.s32.totalorder %s67, 0
      %s70 = sadd.s32 %s69, 1
      %s71 = scalar_select %p68, %s69, %s70
      %p74 = pneg %p68
      %p75 = scmp.eq.s32.totalorder %s20, 1
      %p76 = por %p74, %p75
      %p77 = scmp.ne.s32.totalorder %s69, %s72
      %p78 = scmp.eq.s32.totalorder %s20, 0
      %p79 = por %p77, %p78
      %p80 = scmp.ne.s32.totalorder %s69, %s72
      %p81 = scmp.eq.s32.totalorder %s25, 1
      %p82 = por %p80, %p81
      %p83 = scmp.ne.s32.totalorder %s72, %s73
      %p84 = scmp.eq.s32.totalorder %s25, 0
      %p85 = por %p83, %p84
      %p86 = scmp.ne.s32.totalorder %s72, %s73
      %p87 = scmp.eq.s32.totalorder %s26, 1
      %p88 = por %p86, %p87
      %p90 = scmp.ne.s32.totalorder %s73, %s89
      %p91 = scmp.eq.s32.totalorder %s26, 0
      %p92 = por %p90, %p91
      %s93 = sadd.s32 %s27, %s28
      %p94 = scmp.lt.s32.totalorder %s93, 0
      %s95 = scalar_select %p94, %s93, 0
      %s96 = sadd.s32 %s39, %s35
      %p97 = scmp.lt.s32.totalorder %s96, 0
      %s98 = scalar_select %p97, %s96, 0
      %s99 = ssub.s32 %s95, %s98
      %p100 = scmp.eq.s32.totalorder %s99, 0
      %s102 = sadd.s32 %s101, 1
      %s103 = scalar_select %p100, %s101, %s102
      %p106 = pneg %p100
      %p107 = scmp.eq.s32.totalorder %s20, 1
      %p108 = por %p106, %p107
      %p109 = scmp.ne.s32.totalorder %s101, %s104
      %p110 = scmp.eq.s32.totalorder %s20, 0
      %p111 = por %p109, %p110
      %p112 = scmp.ne.s32.totalorder %s101, %s104
      %p113 = scmp.eq.s32.totalorder %s25, 1
      %p114 = por %p112, %p113
      %p115 = scmp.ne.s32.totalorder %s104, %s105
      %p116 = scmp.eq.s32.totalorder %s25, 0
      %p117 = por %p115, %p116
      %p118 = scmp.ne.s32.totalorder %s104, %s105
      %p119 = scmp.eq.s32.totalorder %s26, 1
      %p120 = por %p118, %p119
      %p122 = scmp.ne.s32.totalorder %s105, %s121
      %p123 = scmp.eq.s32.totalorder %s26, 0
      %p124 = por %p122, %p123
      %s125 = sadd.s32 %s27, %s28
      %p126 = scmp.lt.s32.totalorder %s125, 0
      %s127 = scalar_select %p126, %s125, 0
      %s128 = sadd.s32 %s39, %s35
      %p129 = scmp.lt.s32.totalorder %s128, 0
      %s130 = scalar_select %p129, %s128, 0
      %s131 = ssub.s32 %s127, %s130
      %p132 = scmp.eq.s32.totalorder %s131, 0
      %s134 = sadd.s32 %s133, 1
      %s135 = scalar_select %p132, %s133, %s134
      %p138 = pneg %p132
      %p139 = scmp.eq.s32.totalorder %s20, 1
      %p140 = por %p138, %p139
      %p141 = scmp.ne.s32.totalorder %s133, %s136
      %p142 = scmp.eq.s32.totalorder %s20, 0
      %p143 = por %p141, %p142
      %p144 = scmp.ne.s32.totalorder %s133, %s136
      %p145 = scmp.eq.s32.totalorder %s25, 1
      %p146 = por %p144, %p145
      %p147 = scmp.ne.s32.totalorder %s136, %s137
      %p148 = scmp.eq.s32.totalorder %s25, 0
      %p149 = por %p147, %p148
      %p150 = scmp.ne.s32.totalorder %s136, %s137
      %p151 = scmp.eq.s32.totalorder %s26, 1
      %p152 = por %p150, %p151
      %p154 = scmp.ne.s32.totalorder %s137, %s153
      %p155 = scmp.eq.s32.totalorder %s26, 0
      %p156 = por %p154, %p155
      %s157 = ssub.s32 %s27, %s39
      %p158 = scmp.eq.s32.totalorder %s157, 0
      %s160 = sadd.s32 %s159, 1
      %s161 = scalar_select %p158, %s159, %s160
      %p164 = pneg %p158
      %p165 = scmp.eq.s32.totalorder %s20, 1
      %p166 = por %p164, %p165
      %p167 = scmp.ne.s32.totalorder %s159, %s162
      %p168 = scmp.eq.s32.totalorder %s20, 0
      %p169 = por %p167, %p168
      %p170 = scmp.ne.s32.totalorder %s159, %s162
      %p171 = scmp.eq.s32.totalorder %s25, 1
      %p172 = por %p170, %p171
      %p173 = scmp.ne.s32.totalorder %s162, %s163
      %p174 = scmp.eq.s32.totalorder %s25, 0
      %p175 = por %p173, %p174
      %p176 = scmp.ne.s32.totalorder %s162, %s163
      %p177 = scmp.eq.s32.totalorder %s26, 1
      %p178 = por %p176, %p177
      %p180 = scmp.ne.s32.totalorder %s163, %s179
      %p181 = scmp.eq.s32.totalorder %s26, 0
      %p182 = por %p180, %p181
      %p183 = scmp.le.s32.totalorder 1, %s20
      %p184 = scmp.lt.s32.totalorder %s20, 3
      %p185 = pnand %p183, %p184
      %p186 = pneg %p185
      // Predicated region
      $region9: #{tpu_custom_call.1} parent=5 // pred_check
        _
      $region10: #{tpu_custom_call.1} parent=5 // pred_check_branch
        %188 = sbr.rel (%p185) target = $region12
      $region11: #{tpu_custom_call.1} parent=5 // pred_region
        %s189 = ssub.s32 %s20, 1
        // Predicated region
        $region13: #{tpu_custom_call.1} parent=11 // pred_check
          %p190 = pneg %p53
        $region14: #{tpu_custom_call.1} parent=11 // pred_check_branch
          %192 = sbr.rel (%p190) target = $region16
        $region15: #{tpu_custom_call.1} parent=11 // pred_region
          _
        $region16: #{tpu_custom_call.1} parent=11 // pred_fallthru
          _
      $region12: #{tpu_custom_call.1} parent=5 // pred_fallthru
        _
      %p193 = scmp.lt.s32.totalorder %s20, 2
      // Predicated region
      $region17: #{tpu_custom_call.1} parent=5 // pred_check
        %p194 = pneg %p193
      $region18: #{tpu_custom_call.1} parent=5 // pred_check_branch
        %196 = sbr.rel (%p194) target = $region20
      $region19: #{tpu_custom_call.1} parent=5 // pred_region
        // Predicated region
        $region21: #{tpu_custom_call.1} parent=19 // pred_check
          %p197 = pneg %p79
        $region22: #{tpu_custom_call.1} parent=19 // pred_check_branch
          %199 = sbr.rel (%p197) target = $region24
        $region23: #{tpu_custom_call.1} parent=19 // pred_region
          %s200 = sand.u32 %s69, 1
          %s201 = scalar_lea.sflag [#allocation5], %s200
          %s202 = sand.u32 %s69, 1
          %s203 = smul.addr %s202, 8
          %s204 = scalar_lea.vmem [#allocation4], %s203
          %s205 = sadd.s32 %s27, %s28
          %p206 = scmp.lt.s32.totalorder %s205, 0
          %s207 = scalar_select %p206, %s205, 0
          %s209 = ssub.s32 128, 128
          %210 = vsyncadd %s201, %s209
          %s211 = smul.addr %s207, 128
          %s212 = scalar_lea.hbm %s1, %s211
          %s214 = sshll.u32 %s204, 4
          %s215 = int_to_ptr.vmem [resolvable:$true] %s214
          %217 = dma.hbm_to_vmem [thread:$0]  %s212, 128, %s215, %s201
        $region24: #{tpu_custom_call.1} parent=19 // pred_fallthru
          _
        // Predicated region
        $region25: #{tpu_custom_call.1} parent=19 // pred_check
          %p218 = pneg %p111
        $region26: #{tpu_custom_call.1} parent=19 // pred_check_branch
          %220 = sbr.rel (%p218) target = $region28
        $region27: #{tpu_custom_call.1} parent=19 // pred_region
          %s221 = sand.u32 %s20, 1
          %s222 = scalar_lea.sflag [#allocation8], %s221
          %s223 = sand.u32 %s101, 1
          %s224 = smul.addr %s223, 8
          %s225 = scalar_lea.vmem [#allocation7], %s224
          %s226 = sadd.s32 %s27, %s28
          %p227 = scmp.lt.s32.totalorder %s226, 0
          %s228 = scalar_select %p227, %s226, 0
          %s230 = ssub.s32 128, 128
          %231 = vsyncadd %s222, %s230
          %s232 = smul.addr %s228, 128
          %s233 = scalar_lea.hbm %s2, %s232
          %s235 = sshll.u32 %s225, 4
          %s236 = int_to_ptr.vmem [resolvable:$true] %s235
          %238 = dma.hbm_to_vmem [thread:$0]  %s233, 128, %s236, %s222
        $region28: #{tpu_custom_call.1} parent=19 // pred_fallthru
          _
        // Predicated region
        $region29: #{tpu_custom_call.1} parent=19 // pred_check
          %p239 = pneg %p143
        $region30: #{tpu_custom_call.1} parent=19 // pred_check_branch
          %241 = sbr.rel (%p239) target = $region32
        $region31: #{tpu_custom_call.1} parent=19 // pred_region
          %s242 = sand.u32 %s20, 1
          %s243 = scalar_lea.sflag [#allocation8], %s242
          %s244 = sand.u32 %s133, 1
          %s245 = smul.addr %s244, 8
          %s246 = scalar_lea.vmem [#allocation9], %s245
          %s247 = sadd.s32 %s27, %s28
          %p248 = scmp.lt.s32.totalorder %s247, 0
          %s249 = scalar_select %p248, %s247, 0
          %s251 = ssub.s32 128, 128
          %252 = vsyncadd %s243, %s251
          %s253 = smul.addr %s249, 128
          %s254 = scalar_lea.hbm %s3, %s253
          %s256 = sshll.u32 %s246, 4
          %s257 = int_to_ptr.vmem [resolvable:$true] %s256
          %259 = dma.hbm_to_vmem [thread:$0]  %s254, 128, %s257, %s243
        $region32: #{tpu_custom_call.1} parent=19 // pred_fallthru
          _
      $region20: #{tpu_custom_call.1} parent=5 // pred_fallthru
        _
      %p260 = scmp.le.s32.totalorder 1, %s20
      %p261 = scmp.lt.s32.totalorder %s20, 3
      %p262 = pnand %p260, %p261
      %p263 = pneg %p262
      // Predicated region
      $region33: #{tpu_custom_call.1} parent=5 // pred_check
        _
      $region34: #{tpu_custom_call.1} parent=5 // pred_check_branch
        %265 = sbr.rel (%p262) target = $region36
      $region35: #{tpu_custom_call.1} parent=5 // pred_region
        %s266 = ssub.s32 %s20, 1
        %s267 = sand.u32 %s72, 1
        %s268 = scalar_lea.sflag [#allocation5], %s267
        %s269 = sand.u32 %s72, 1
        %s270 = smul.addr %s269, 8
        %s271 = scalar_lea.vmem [#allocation4], %s270
        // Predicated region
        $region37: #{tpu_custom_call.1} parent=35 // pred_check
          %p272 = pneg %p85
        $region38: #{tpu_custom_call.1} parent=35 // pred_check_branch
          %274 = sbr.rel (%p272) target = $region40
        $region39: #{tpu_custom_call.1} parent=35 // pred_region
          %275 = dma.done %s268, 128
        $region40: #{tpu_custom_call.1} parent=35 // pred_fallthru
          _
        %s276 = sand.u32 %s25, 1
        %s277 = scalar_lea.sflag [#allocation8], %s276
        %s278 = sand.u32 %s104, 1
        %s279 = smul.addr %s278, 8
        %s280 = scalar_lea.vmem [#allocation7], %s279
        // Predicated region
        $region41: #{tpu_custom_call.1} parent=35 // pred_check
          %p281 = pneg %p117
        $region42: #{tpu_custom_call.1} parent=35 // pred_check_branch
          %283 = sbr.rel (%p281) target = $region44
        $region43: #{tpu_custom_call.1} parent=35 // pred_region
          %284 = dma.done %s277, 128
        $region44: #{tpu_custom_call.1} parent=35 // pred_fallthru
          _
        %s285 = sand.u32 %s25, 1
        %s286 = scalar_lea.sflag [#allocation8], %s285
        %s287 = sand.u32 %s136, 1
        %s288 = smul.addr %s287, 8
        %s289 = scalar_lea.vmem [#allocation9], %s288
        // Predicated region
        $region45: #{tpu_custom_call.1} parent=35 // pred_check
          %p290 = pneg %p149
        $region46: #{tpu_custom_call.1} parent=35 // pred_check_branch
          %292 = sbr.rel (%p290) target = $region48
        $region47: #{tpu_custom_call.1} parent=35 // pred_region
          %293 = dma.done %s286, 128
        $region48: #{tpu_custom_call.1} parent=35 // pred_fallthru
          _
        %p294 = pneg %p53
        %p295 = pneg %p50
        %s296 = sand.u32 %s72, 1
        %s297 = scalar_lea.sflag [#allocation5], %s296
        %s298 = sand.u32 %s72, 1
        %s299 = smul.addr %s298, 8
        %s300 = scalar_lea.vmem [#allocation4], %s299
        %p301 = pneg %p85
        %p302 = pneg %p82
        %s303 = sand.u32 %s25, 1
        %s304 = scalar_lea.sflag [#allocation8], %s303
        %s305 = sand.u32 %s104, 1
        %s306 = smul.addr %s305, 8
        %s307 = scalar_lea.vmem [#allocation7], %s306
        %p308 = pneg %p117
        %p309 = pneg %p114
        %s310 = sand.u32 %s25, 1
        %s311 = scalar_lea.sflag [#allocation8], %s310
        %s312 = sand.u32 %s136, 1
        %s313 = smul.addr %s312, 8
        %s314 = scalar_lea.vmem [#allocation9], %s313
        %p315 = pneg %p149
        %p316 = pneg %p146
        %p317 = pneg %p175
        %p318 = pneg %p172
        %s319 = sand.u32 %s162, 1
        %s320 = scalar_lea.sflag [#allocation6], %s319
        %s321 = sand.u32 %s162, 1
        %s322 = smul.addr %s321, 8
        %s323 = scalar_lea.vmem [#allocation10], %s322
        %s324 = sadd.s32 %s29, %s30
        %p325 = scmp.lt.s32.totalorder %s324, 0
        %s326 = scalar_select %p325, %s324, 0
        %s327 = sadd.s32 %s29, %s30
        %p328 = scmp.lt.s32.totalorder %s327, 0
        %s329 = scalar_select %p328, %s327, 0
        %s330 = sadd.s32 %s29, %s30
        %p331 = scmp.lt.s32.totalorder %s330, 0
        %s332 = scalar_select %p331, %s330, 0
        %p333 = scmp.eq.s32.totalorder %s30, 0
        // Predicated region
        $region49: #{tpu_custom_call.1} parent=35 // pred_check
          %p334 = pneg %p333
        $region50: #{tpu_custom_call.1} parent=35 // pred_check_branch
          %336 = sbr.rel (%p334) target = $region52
        $region51: #{tpu_custom_call.1} parent=35 // pred_region
          %vm337 = vcmask 0
          %338 = vst.msk [vmem:[#allocation2] sm:$0x1] %vm337, 0.0
        $region52: #{tpu_custom_call.1} parent=35 // pred_fallthru
          _
        %v339 = vld [vmem:[%s271] sm:$0xff]
        %v340 = vld [vmem:[%s280] sm:$0xff]
        %v341 = vld [vmem:[%s289] sm:$0xff]
        %v342 = vmul.f32 %v339, %v340
        %vm343 = vcmask 261120
        %v344 = vsel %vm343, %v342, 0.0
        %345 = vadd.xlane.f32.xlu0 %v344
        %v346 = vpop.xlane.xlu0 %345
        %v347 = vmul.f32 %v339, %v341
        %v348 = vsel %vm343, %v347, 0.0
        %349 = vadd.xlane.f32.xlu0 %v348
        %v350 = vpop.xlane.xlu0 %349
        %v351 = vmul.f32 %v339, %v339
        %v352 = vsel %vm343, %v351, 0.0
        %353 = vadd.xlane.f32.xlu0 %v352
        %v354 = vpop.xlane.xlu0 %353
        %v355 = vmul.f32 %v340, %v340
        %v356 = vsel %vm343, %v355, 0.0
        %357 = vadd.xlane.f32.xlu0 %v356
        %v358 = vpop.xlane.xlu0 %357
        %v359 = vmul.f32 %v341, %v341
        %v360 = vsel %vm343, %v359, 0.0
        %361 = vadd.xlane.f32.xlu0 %v360
        %v362 = vpop.xlane.xlu0 %361
        %v363 = vrsqrt.pop %v354
        %v364 = vmul.f32 %v346, %v363
        %v365 = vrsqrt.pop %v358
        %v366 = vmul.f32 %v364, %v365
        %v367 = vmul.f32 %v350, %v363
        %v368 = vrsqrt.pop %v362
        %v369 = vmul.f32 %v367, %v368
        %s370 = sld [smem:[#allocation3]]
        %v371 = vsub.f32 %v369, %v366
        %v372 = vstv %s370
        %v373 = vadd.f32 %v371, %v372
        %v374 = vmax.f32 %v373, 0.0
        %s375 = sadd.s32 %s29, %s30
        %v376 = vlaneseq
        %v377 = vshrl.u32 %v376, 7
        %s378 = smul.u32 %s375, 8
        %v379 = vstv %s378
        %v380 = vadd.s32 %v377, %v379
        %vm381 = vcmp.lt.s32.totalorder %v380, 8
        %v382 = vsel %vm381, %v374, 0.0
        %v383 = vld [vmem:[#allocation2] sm:$0x1]
        %vm384 = vcmask 7168
        %v385 = vsel %vm384, %v382, 0.0
        %386 = vadd.xlane.f32.xlu0 %v385
        %v387 = vpop.xlane.xlu0 %386
        %v388 = vrot.slane %v387, 4
        %v389 = vadd.f32 %v387, %v388
        %v390 = vrot.slane %v389, 2
        %v391 = vadd.f32 %v389, %v390
        %v392 = vrot.slane %v391, 1
        %v393 = vadd.f32 %v391, %v392
        %s394 = vtos %v393
        %v395 = vstv %s394
        %v396 = vadd.f32 %v383, %v395
        %vm397 = vcmask 0
        %398 = vst.msk [vmem:[#allocation2] sm:$0x1] %vm397, %v396
        // Predicated region
        $region53: #{tpu_custom_call.1} parent=35 // pred_check
          %p399 = pneg %p333
        $region54: #{tpu_custom_call.1} parent=35 // pred_check_branch
          %401 = sbr.rel (%p399) target = $region56
        $region55: #{tpu_custom_call.1} parent=35 // pred_region
          %v402 = vld [vmem:[#allocation2] sm:$0x1]
          %v404 = vlaneseq
          %v405 = vshrl.u32 %v404, 7
          %v406 = vsub.s32 0, %v405
          %v407 = vrot.slane %v402, %v406
          %408 = vset.pattern.permute.xlu0 0
          %409 = vperm.xlu0 %408, %v407
          %v410 = vpop.permute.xlu0 %409
          %412 = vst [vmem:[%s323] sm:$0xff] %v410
        $region56: #{tpu_custom_call.1} parent=35 // pred_fallthru
          _
        %s413 = sand.u32 %s162, 1
        %s414 = scalar_lea.sflag [#allocation6], %s413
        %s415 = sand.u32 %s162, 1
        %s416 = smul.addr %s415, 8
        %s417 = scalar_lea.vmem [#allocation10], %s416
        // Predicated region
        $region57: #{tpu_custom_call.1} parent=35 // pred_check
          %p418 = pneg %p172
        $region58: #{tpu_custom_call.1} parent=35 // pred_check_branch
          %420 = sbr.rel (%p418) target = $region60
        $region59: #{tpu_custom_call.1} parent=35 // pred_region
          %s422 = ssub.s32 128, 128
          %423 = vsyncadd %s414, %s422
          %s424 = smul.addr %s29, 128
          %s425 = scalar_lea.hbm %s4, %s424
          %s427 = sshll.u32 %s417, 4
          %s428 = int_to_ptr.vmem [resolvable:$true] %s427
          %430 = dma.vmem_to_hbm [thread:$0]  %s428, 128, %s425, %s414
        $region60: #{tpu_custom_call.1} parent=35 // pred_fallthru
          _
      $region36: #{tpu_custom_call.1} parent=5 // pred_fallthru
        _
      %p431 = scmp.le.s32.totalorder 2, %s20
      // Predicated region
      $region61: #{tpu_custom_call.1} parent=5 // pred_check
        %p432 = pneg %p431
      $region62: #{tpu_custom_call.1} parent=5 // pred_check_branch
        %434 = sbr.rel (%p432) target = $region64
      $region63: #{tpu_custom_call.1} parent=5 // pred_region
        %s435 = ssub.s32 %s20, 2
        // Predicated region
        $region65: #{tpu_custom_call.1} parent=63 // pred_check
          %p436 = pneg %p178
        $region66: #{tpu_custom_call.1} parent=63 // pred_check_branch
          %438 = sbr.rel (%p436) target = $region68
        $region67: #{tpu_custom_call.1} parent=63 // pred_region
          %s439 = sand.u32 %s163, 1
          %s440 = scalar_lea.sflag [#allocation6], %s439
          %s441 = sand.u32 %s163, 1
          %s442 = smul.addr %s441, 8
          %s443 = scalar_lea.vmem [#allocation10], %s442
          %444 = dma.done %s440, 128
        $region68: #{tpu_custom_call.1} parent=63 // pred_fallthru
          _
      $region64: #{tpu_custom_call.1} parent=5 // pred_fallthru
        _
    $region6: #{tpu_custom_call.1} parent=1 // loop_footer
      %s24 = sadd.s32 1, %s20
    $region7: #{tpu_custom_call.1} parent=1 // loop_footer_branch
      %19 = sbr.rel target = $region3
    $region8: #{tpu_custom_call.1} parent=1 // loop_exit
      _
    %445 = vsyncpa [#allocation5], 1
    %s446 = scalar_lea.sflag [#allocation5], 1
    %447 = vsyncpa %s446, 1
    %448 = vsyncpa [#allocation8], 1
    %s449 = scalar_lea.sflag [#allocation8], 1
    %450 = vsyncpa %s449, 1
    %451 = vsyncpa [#allocation6], 1
    %s452 = scalar_lea.sflag [#allocation6], 1
    %453 = vsyncpa %s452, 1

</llo_original>
